<compile_context>
chip_gen: v7x
topology: tpu7x:2x2x1
jax: 0.10.0
libtpu: 0.0.40
codegen_flags: <defaults>
</compile_context>

<pallas_src>
import math
import jax
import jax.numpy as jnp
from jax.experimental import pallas as pl
from jax.experimental.pallas import tpu as pltpu

NOISY_LAYER_STD = 0.1  # Config.NOISY_LAYER_STD in the reference repo


# ----------------------------- Pallas kernels -------------------------------
def _noisy_train_kernel(x_ref, fin_ref, wmu_ref, wsig_ref, fout_ref, b_ref,
                        o_ref, acc_mu_ref, acc_sig_ref):
    """Training mode via the factorized-noise identity:
       out = x @ wmu.T + f_out * ((x * f_in) @ wsig.T) + bias_eff."""
    k = pl.program_id(2)

    @pl.when(k == 0)
    def _():
        acc_mu_ref[...] = jnp.zeros_like(acc_mu_ref)
        acc_sig_ref[...] = jnp.zeros_like(acc_sig_ref)

    x = x_ref[...]                              # (tm, tk) f32
    # Scale x by the lane-dense f_in row in f32 (v5e has no bf16 VALU);
    # cast to the MXU dtype only right before the dots.
    xs = x * fin_ref[...]                       # (tm, tk) f32
    x_mx = x.astype(wmu_ref.dtype)
    xs_mx = xs.astype(wsig_ref.dtype)

    dn = (((1,), (1,)), ((), ()))               # contract over shared `in` dim (last)
    acc_mu_ref[...] += jax.lax.dot_general(
        x_mx, wmu_ref[...], dimension_numbers=dn,
        preferred_element_type=jnp.float32)
    acc_sig_ref[...] += jax.lax.dot_general(
        xs_mx, wsig_ref[...], dimension_numbers=dn,
        preferred_element_type=jnp.float32)

    @pl.when(k == pl.num_programs(2) - 1)
    def _():
        # f_out is a lane-dense (1, tn) row; applied once, off the per-K-step path.
        o_ref[...] = (acc_mu_ref[...]
                      + fout_ref[...] * acc_sig_ref[...]
                      + b_ref[...]).astype(o_ref.dtype)


def _noisy_eval_kernel(x_ref, wmu_ref, b_ref, o_ref, acc_ref):
    """Eval mode: plain linear with the mean parameters."""
    k = pl.program_id(2)

    @pl.when(k == 0)
    def _():
        acc_ref[...] = jnp.zeros_like(acc_ref)

    acc_ref[...] += jax.lax.dot_general(
        x_ref[...].astype(wmu_ref.dtype), wmu_ref[...],
        dimension_numbers=(((1,), (1,)), ((), ())),
        preferred_element_type=jnp.float32)

    @pl.when(k == pl.num_programs(2) - 1)
    def _():
        o_ref[...] = (acc_ref[...] + b_ref[...]).astype(o_ref.dtype)


# ------------------------------ helpers --------------------------------------
def _round_up(x, m):
    return ((x + m - 1) // m) * m


def _pad2(a, rows, cols):
    return jnp.pad(a, ((0, rows - a.shape[0]), (0, cols - a.shape[1])))


def _largest_tile(dim_pad, target, unit=128):
    """Largest multiple of `unit` that divides dim_pad and is <= target."""
    best = unit
    hi = max(unit, min(target, dim_pad))
    for t in range(unit, hi + 1, unit):
        if dim_pad % t == 0:
            best = t
    return best


def _vmem_limit_bytes():
    """~75% of physical VMEM: ~48 MiB on v7x, ~96 MiB on v5e/v6e."""
    cap = 64 * 1024 * 1024
    try:
        info = pltpu.get_tpu_info()
        cap = getattr(info, "vmem_capacity_bytes", cap) or cap
    except Exception:
        pass
    return int(cap) * 3 // 4


# ------------------------ one-time parameter preparation ---------------------
def prepare_noisy_linear_params(params, weight_dtype=jnp.bfloat16):
    """Pad (to lane-dense multiples of 128) and cast the weight matrices ONCE,
    pre-combine the bias noise, and keep only the factorized noise vectors.
    Call this once per reset_noise(); reuse the result across forward calls."""
    out_f, in_f = params["weight_mu"].shape
    out_pad = _round_up(out_f, 128)
    in_pad = _round_up(in_f, 128)

    wmu_p = _pad2(params["weight_mu"], out_pad, in_pad).astype(weight_dtype)
    wsig_p = _pad2(params["weight_sigma"], out_pad, in_pad).astype(weight_dtype)

    fin_p = _pad2(params["weight_eps_in"].reshape(1, -1).astype(jnp.float32), 1, in_pad)
    fout_p = _pad2(params["weight_eps_out"].reshape(1, -1).astype(jnp.float32), 1, out_pad)

    bias_mu_p = _pad2(params["bias_mu"].reshape(1, -1).astype(jnp.float32), 1, out_pad)
    bias_eff = (params["bias_mu"]
                + params["bias_sigma"] * params["bias_epsilon"]).reshape(1, -1)
    bias_eff_p = _pad2(bias_eff.astype(jnp.float32), 1, out_pad)

    return {
        "out_features": out_f, "in_features": in_f,
        "out_pad": out_pad, "in_pad": in_pad,
        "wmu_p": wmu_p, "wsig_p": wsig_p,
        "fin_p": fin_p, "fout_p": fout_p,
        "bias_mu_p": bias_mu_p, "bias_eff_p": bias_eff_p,
    }


# ------------------------------ forward wrapper -------------------------------
def noisy_linear_forward(x, prepared, training=True,
                         tm_target=256, tn_target=512, tk_target=1024):
    B, in_f = x.shape
    assert in_f == prepared["in_features"]
    out_f = prepared["out_features"]
    out_pad, in_pad = prepared["out_pad"], prepared["in_pad"]

    tm = min(tm_target, _round_up(B, 8))
    tn = _largest_tile(out_pad, tn_target)
    tk = _largest_tile(in_pad, tk_target)
    B_pad = _round_up(B, tm)

    # v7x has 2 TensorCores: best-effort >=2 blocks along a parallel grid axis.
    if (B_pad // tm) * (out_pad // tn) == 1:
        if tn % 256 == 0:
            tn //= 2
        elif tm % 16 == 0:
            tm //= 2

    x_p = _pad2(x.astype(jnp.float32), B_pad, in_pad)

    grid = (B_pad // tm, out_pad // tn, in_pad // tk)

    x_spec = pl.BlockSpec((tm, tk), lambda i, j, k: (i, k))
    w_spec = pl.BlockSpec((tn, tk), lambda i, j, k: (j, k))
    rowk_spec = pl.BlockSpec((1, tk), lambda i, j, k: (0, k))   # f_in
    rown_spec = pl.BlockSpec((1, tn), lambda i, j, k: (0, j))   # f_out / bias
    o_spec = pl.BlockSpec((tm, tn), lambda i, j, k: (i, j))

    out_shape = jax.ShapeDtypeStruct((B_pad, out_pad), x.dtype)
    cparams = pltpu.CompilerParams(
        dimension_semantics=("parallel", "parallel", "arbitrary"),
        vmem_limit_bytes=_vmem_limit_bytes())

    wbytes = jnp.dtype(prepared["wmu_p"].dtype).itemsize

    if training:
        flops = 4 * B_pad * in_pad * out_pad + B_pad * in_pad + 2 * B_pad * out_pad
        bytes_acc = (4 * B_pad * in_pad + 2 * wbytes * out_pad * in_pad
                     + 4 * (in_pad + 2 * out_pad) + 4 * B_pad * out_pad)
        out = pl.pallas_call(
            _noisy_train_kernel,
            out_shape=out_shape,
            grid=grid,
            in_specs=[x_spec, rowk_spec, w_spec, w_spec, rown_spec, rown_spec],
            out_specs=o_spec,
            scratch_shapes=[pltpu.VMEM((tm, tn), jnp.float32),
                            pltpu.VMEM((tm, tn), jnp.float32)],
            compiler_params=cparams,
            cost_estimate=pl.CostEstimate(flops=flops, transcendentals=0,
                                          bytes_accessed=bytes_acc),
        )(x_p, prepared["fin_p"], prepared["wmu_p"], prepared["wsig_p"],
          prepared["fout_p"], prepared["bias_eff_p"])
    else:
        flops = 2 * B_pad * in_pad * out_pad
        bytes_acc = (4 * B_pad * in_pad + wbytes * out_pad * in_pad
                     + 4 * out_pad + 4 * B_pad * out_pad)
        out = pl.pallas_call(
            _noisy_eval_kernel,
            out_shape=out_shape,
            grid=grid,
            in_specs=[x_spec, w_spec, rown_spec],
            out_specs=o_spec,
            scratch_shapes=[pltpu.VMEM((tm, tn), jnp.float32)],
            compiler_params=cparams,
            cost_estimate=pl.CostEstimate(flops=flops, transcendentals=0,
                                          bytes_accessed=bytes_acc),
        )(x_p, prepared["wmu_p"], prepared["bias_mu_p"])

    return out[:B, :out_f]


# --------------------- deterministic parameter init --------------------------
def _transform_noise(x):
    # x.sign() * x.abs().sqrt()
    return jnp.sign(x) * jnp.sqrt(jnp.abs(x))


def init_noisy_linear(key, in_features, out_features, std_init=0.4):
    k_wmu, k_bmu, k_nin, k_now, k_nob = jax.random.split(key, 5)
    mu_range = 1.0 / math.sqrt(in_features)

    weight_mu = jax.random.uniform(k_wmu, (out_features, in_features),
                                   jnp.float32, -mu_range, mu_range)
    bias_mu = jax.random.uniform(k_bmu, (out_features,),
                                 jnp.float32, -mu_range, mu_range)
    weight_sigma = jnp.full((out_features, in_features),
                            std_init / math.sqrt(in_features), jnp.float32)
    bias_sigma = jnp.full((out_features,),
                          std_init / math.sqrt(out_features), jnp.float32)

    # reset_noise(): the spec module draws noise_in / noise_out_weight /
    # noise_out_bias as THREE independent buffers (bias noise independent of the
    # weight's outer-product noise), so we do the same.  Only the FACTORS of the
    # factorized weight noise are kept; the kernel uses the identity
    # weight_epsilon = f_out ⊗ f_in without ever materializing it.
    noise_in = NOISY_LAYER_STD * jax.random.normal(k_nin, (in_features,), jnp.float32)
    noise_out_weight = NOISY_LAYER_STD * jax.random.normal(k_now, (out_features,), jnp.float32)
    noise_out_bias = NOISY_LAYER_STD * jax.random.normal(k_nob, (out_features,), jnp.float32)

    weight_eps_in = _transform_noise(noise_in)            # (in,)
    weight_eps_out = _transform_noise(noise_out_weight)   # (out,)
    bias_epsilon = _transform_noise(noise_out_bias)       # (out,)

    return {
        "weight_mu": weight_mu,
        "weight_sigma": weight_sigma,
        "weight_eps_in": weight_eps_in,
        "weight_eps_out": weight_eps_out,
        "bias_mu": bias_mu,
        "bias_sigma": bias_sigma,
        "bias_epsilon": bias_epsilon,
    }


# ----------------------------------- main ------------------------------------
if __name__ == "__main__":
    key = jax.random.PRNGKey(0)
    k_params, k_x = jax.random.split(key)

    batch, in_features, out_features = 8, 32, 64
    params = init_noisy_linear(k_params, in_features, out_features, std_init=0.4)
    # Pad + bf16-cast the weights ONCE (per reset_noise), reuse across forwards.
    prepared = prepare_noisy_linear_params(params, weight_dtype=jnp.bfloat16)
    x = jax.random.normal(k_x, (batch, in_features), jnp.float32)

    out = jax.block_until_ready(noisy_linear_forward(x, prepared, training=True))

    # Reference in plain f32 JAX (training path) -- matches PyTorch semantics.
    # bf16 MXU operands => relaxed tolerance (use weight_dtype=jnp.float32 in
    # prepare_noisy_linear_params for an exact-reference debug mode).
    weight_epsilon = jnp.outer(params["weight_eps_out"], params["weight_eps_in"])  # .ger()
    w_ref = params["weight_mu"] + params["weight_sigma"] * weight_epsilon
    b_ref = params["bias_mu"] + params["bias_sigma"] * params["bias_epsilon"]
    ref = x @ w_ref.T + b_ref
    assert out.shape == (batch, out_features)
    assert jnp.allclose(out, ref, atol=3e-2, rtol=3e-2)

    # Eval path (plain linear with the mean parameters).
    out_eval = jax.block_until_ready(noisy_linear_forward(x, prepared, training=False))
    ref_eval = x @ params["weight_mu"].T + params["bias_mu"]
    assert jnp.allclose(out_eval, ref_eval, atol=3e-2, rtol=3e-2)

    print("KERNEL_OK")
</pallas_src>

<mosaic_0001>
module attributes {stable_mosaic.version = 11 : i64} {
  func.func @_noisy_train_kernel(%arg0: i32, %arg1: i32, %arg2: i32, %arg3: memref<8x128xf32, #tpu.memory_space<vmem>>, %arg4: memref<1x128xf32, #tpu.memory_space<vmem>>, %arg5: memref<128x128xbf16, #tpu.memory_space<vmem>>, %arg6: memref<128x128xbf16, #tpu.memory_space<vmem>>, %arg7: memref<1x128xf32, #tpu.memory_space<vmem>>, %arg8: memref<1x128xf32, #tpu.memory_space<vmem>>, %arg9: memref<8x128xf32, #tpu.memory_space<vmem>>, %arg10: memref<8x128xf32, #tpu.memory_space<vmem>>, %arg11: memref<8x128xf32, #tpu.memory_space<vmem>>) attributes {dimension_semantics = [#tpu.dimension_semantics<parallel>, #tpu.dimension_semantics<parallel>, #tpu.dimension_semantics<arbitrary>], iteration_bounds = array<i64: 1, 1, 1>, scalar_prefetch = 0 : i64, scratch_operands = 2 : i64, tpu.core_type = #tpu.core_type<tc>, window_params = [{transform_indices = @transform_0, window_bounds = array<i64: 8, 128>}, {transform_indices = @transform_1, window_bounds = array<i64: 1, 128>}, {transform_indices = @transform_2, window_bounds = array<i64: 128, 128>}, {transform_indices = @transform_3, window_bounds = array<i64: 128, 128>}, {transform_indices = @transform_4, window_bounds = array<i64: 1, 128>}, {transform_indices = @transform_5, window_bounds = array<i64: 1, 128>}, {transform_indices = @transform_6, window_bounds = array<i64: 8, 128>}]} {
    %c0_i32 = arith.constant 0 : i32
    %0 = arith.cmpi eq, %arg2, %c0_i32 : i32
    %1 = arith.extui %0 : i1 to i32
    %c0_i32_0 = arith.constant 0 : i32
    %2 = arith.cmpi ne, %1, %c0_i32_0 : i32
    scf.if %2 {
      %cst_19 = arith.constant 0.000000e+00 : f32
      %22 = vector.broadcast %cst_19 : f32 to vector<8x128xf32>
      %c0_20 = arith.constant 0 : index
      %c0_21 = arith.constant 0 : index
      %23 = vector.load %arg10[%c0_20, %c0_21] : memref<8x128xf32, #tpu.memory_space<vmem>>, vector<8x128xf32>
      tpu.vector_store %arg10[%c0_20, %c0_21], %22 {strides = array<i32>} : memref<8x128xf32, #tpu.memory_space<vmem>>, vector<8x128xf32>,
      %cst_22 = arith.constant 0.000000e+00 : f32
      %24 = vector.broadcast %cst_22 : f32 to vector<8x128xf32>
      %c0_23 = arith.constant 0 : index
      %c0_24 = arith.constant 0 : index
      %25 = vector.load %arg11[%c0_23, %c0_24] : memref<8x128xf32, #tpu.memory_space<vmem>>, vector<8x128xf32>
      tpu.vector_store %arg11[%c0_23, %c0_24], %24 {strides = array<i32>} : memref<8x128xf32, #tpu.memory_space<vmem>>, vector<8x128xf32>,
    } else {
    }
    %c0 = arith.constant 0 : index
    %c0_1 = arith.constant 0 : index
    %3 = vector.load %arg3[%c0, %c0_1] : memref<8x128xf32, #tpu.memory_space<vmem>>, vector<8x128xf32>
    %c0_2 = arith.constant 0 : index
    %c0_3 = arith.constant 0 : index
    %4 = vector.load %arg4[%c0_2, %c0_3] : memref<1x128xf32, #tpu.memory_space<vmem>>, vector<1x128xf32>
    %5 = vector.broadcast %4 : vector<1x128xf32> to vector<8x128xf32>
    %6 = arith.mulf %3, %5 : vector<8x128xf32>
    %7 = arith.truncf %3 : vector<8x128xf32> to vector<8x128xbf16>
    %8 = arith.truncf %6 : vector<8x128xf32> to vector<8x128xbf16>
    %c0_4 = arith.constant 0 : index
    %c0_5 = arith.constant 0 : index
    %9 = vector.load %arg10[%c0_4, %c0_5] : memref<8x128xf32, #tpu.memory_space<vmem>>, vector<8x128xf32>
    %c0_6 = arith.constant 0 : index
    %c0_7 = arith.constant 0 : index
    %10 = vector.load %arg5[%c0_6, %c0_7] : memref<128x128xbf16, #tpu.memory_space<vmem>>, vector<128x128xbf16>
    %cst = arith.constant dense<0.000000e+00> : vector<8x128xf32>
    %11 = tpu.matmul %7, %10, %cst {dimension_numbers = #tpu.dot_dimension_numbers<[1], [1], [0], [0], [0, 0, 1, 0], [], []>} : vector<8x128xbf16>, vector<128x128xbf16>, vector<8x128xf32> -> vector<8x128xf32>
    %12 = arith.addf %9, %11 : vector<8x128xf32>
    %c0_8 = arith.constant 0 : index
    %c0_9 = arith.constant 0 : index
    %13 = vector.load %arg10[%c0_8, %c0_9] : memref<8x128xf32, #tpu.memory_space<vmem>>, vector<8x128xf32>
    tpu.vector_store %arg10[%c0_8, %c0_9], %12 {strides = array<i32>} : memref<8x128xf32, #tpu.memory_space<vmem>>, vector<8x128xf32>,
    %c0_10 = arith.constant 0 : index
    %c0_11 = arith.constant 0 : index
    %14 = vector.load %arg11[%c0_10, %c0_11] : memref<8x128xf32, #tpu.memory_space<vmem>>, vector<8x128xf32>
    %c0_12 = arith.constant 0 : index
    %c0_13 = arith.constant 0 : index
    %15 = vector.load %arg6[%c0_12, %c0_13] : memref<128x128xbf16, #tpu.memory_space<vmem>>, vector<128x128xbf16>
    %cst_14 = arith.constant dense<0.000000e+00> : vector<8x128xf32>
    %16 = tpu.matmul %8, %15, %cst_14 {dimension_numbers = #tpu.dot_dimension_numbers<[1], [1], [0], [0], [0, 0, 1, 0], [], []>} : vector<8x128xbf16>, vector<128x128xbf16>, vector<8x128xf32> -> vector<8x128xf32>
    %17 = arith.addf %14, %16 : vector<8x128xf32>
    %c0_15 = arith.constant 0 : index
    %c0_16 = arith.constant 0 : index
    %18 = vector.load %arg11[%c0_15, %c0_16] : memref<8x128xf32, #tpu.memory_space<vmem>>, vector<8x128xf32>
    tpu.vector_store %arg11[%c0_15, %c0_16], %17 {strides = array<i32>} : memref<8x128xf32, #tpu.memory_space<vmem>>, vector<8x128xf32>,
    %c0_i32_17 = arith.constant 0 : i32
    %19 = arith.cmpi eq, %arg2, %c0_i32_17 : i32
    %20 = arith.extui %19 : i1 to i32
    %c0_i32_18 = arith.constant 0 : i32
    %21 = arith.cmpi ne, %20, %c0_i32_18 : i32
    scf.if %21 {
      %c0_19 = arith.constant 0 : index
      %c0_20 = arith.constant 0 : index
      %22 = vector.load %arg10[%c0_19, %c0_20] : memref<8x128xf32, #tpu.memory_space<vmem>>, vector<8x128xf32>
      %c0_21 = arith.constant 0 : index
      %c0_22 = arith.constant 0 : index
      %23 = vector.load %arg7[%c0_21, %c0_22] : memref<1x128xf32, #tpu.memory_space<vmem>>, vector<1x128xf32>
      %c0_23 = arith.constant 0 : index
      %c0_24 = arith.constant 0 : index
      %24 = vector.load %arg11[%c0_23, %c0_24] : memref<8x128xf32, #tpu.memory_space<vmem>>, vector<8x128xf32>
      %25 = vector.broadcast %23 : vector<1x128xf32> to vector<8x128xf32>
      %26 = arith.mulf %25, %24 : vector<8x128xf32>
      %27 = arith.addf %22, %26 : vector<8x128xf32>
      %c0_25 = arith.constant 0 : index
      %c0_26 = arith.constant 0 : index
      %28 = vector.load %arg8[%c0_25, %c0_26] : memref<1x128xf32, #tpu.memory_space<vmem>>, vector<1x128xf32>
      %29 = vector.broadcast %28 : vector<1x128xf32> to vector<8x128xf32>
      %30 = arith.addf %27, %29 : vector<8x128xf32>
      %c0_27 = arith.constant 0 : index
      %c0_28 = arith.constant 0 : index
      %31 = vector.load %arg9[%c0_27, %c0_28] : memref<8x128xf32, #tpu.memory_space<vmem>>, vector<8x128xf32>
      tpu.vector_store %arg9[%c0_27, %c0_28], %30 {strides = array<i32>} : memref<8x128xf32, #tpu.memory_space<vmem>>, vector<8x128xf32>,
    } else {
    }
    return
  }
  func.func @transform_0(%arg0: i32, %arg1: i32, %arg2: i32) -> (i32, i32) {
    %c0_i32 = arith.constant 0 : i32
    return %arg0, %arg2 : i32, i32
  }
  func.func @transform_1(%arg0: i32, %arg1: i32, %arg2: i32) -> (i32, i32) {
    %c0_i32 = arith.constant 0 : i32
    %c0_i32_0 = arith.constant 0 : i32
    return %c0_i32, %arg2 : i32, i32
  }
  func.func @transform_2(%arg0: i32, %arg1: i32, %arg2: i32) -> (i32, i32) {
    %c0_i32 = arith.constant 0 : i32
    return %arg1, %arg2 : i32, i32
  }
  func.func @transform_3(%arg0: i32, %arg1: i32, %arg2: i32) -> (i32, i32) {
    %c0_i32 = arith.constant 0 : i32
    return %arg1, %arg2 : i32, i32
  }
  func.func @transform_4(%arg0: i32, %arg1: i32, %arg2: i32) -> (i32, i32) {
    %c0_i32 = arith.constant 0 : i32
    %c0_i32_0 = arith.constant 0 : i32
    return %c0_i32, %arg1 : i32, i32
  }
  func.func @transform_5(%arg0: i32, %arg1: i32, %arg2: i32) -> (i32, i32) {
    %c0_i32 = arith.constant 0 : i32
    %c0_i32_0 = arith.constant 0 : i32
    return %c0_i32, %arg1 : i32, i32
  }
  func.func @transform_6(%arg0: i32, %arg1: i32, %arg2: i32) -> (i32, i32) {
    %c0_i32 = arith.constant 0 : i32
    return %arg0, %arg1 : i32, i32
  }
}

</mosaic_0001>

<llo_original>
// kernel: tpu_custom_call.1
$region0: #{tpu_custom_call.1}
  #allocation0 [shape = 'u32[]', space=smem, size = 0x4, offset = 0x4, fixed_abs, tag = 'smem constant byte address 0x4 - core index']
  #allocation1 [shape = 'u32[144,128]{1,0:T(1,128)}', space=vmem, size = 0x12000, scoped, tag = 'internal scratch']
  #allocation2 [shape = 'f32[8,128]{1,0:T(8,128)}', space=vmem, size = 0x1000, scoped, tag = 'scratch operand']
  #allocation3 [shape = 'f32[8,128]{1,0:T(8,128)}', space=vmem, size = 0x1000, scoped, tag = 'scratch operand']
  %s0 = inlined_call_operand.hbm [shape: f32[8,128], index: 0, kind: input, shape index: {}]
  %s1 = inlined_call_operand.vmem [shape: f32[1,128], index: 1, kind: input, shape index: {}]
  %s2 = inlined_call_operand.hbm [shape: bf16[128,128], index: 2, kind: input, shape index: {}]
  %s3 = inlined_call_operand.hbm [shape: bf16[128,128], index: 3, kind: input, shape index: {}]
  %s4 = inlined_call_operand.vmem [shape: f32[1,128], index: 4, kind: input, shape index: {}]
  %s5 = inlined_call_operand.vmem [shape: f32[1,128], index: 5, kind: input, shape index: {}]
  %s6 = inlined_call_operand.hbm [shape: f32[8,128], index: 6, kind: output, shape index: {}]
  %s7 = sld [smem:[#allocation0]]
  $region54: #{tpu_custom_call.1} parent=0
    _
  %s9 = ssub.s32 1, %s7
  %s10 = scalar_select 0, %s9, %s7
  $region1: #{tpu_custom_call.1} parent=0
    #allocation4 [shape = 'u8[4096]{0}', space=vmem, size = 0x1000, scoped, tag = 'input window, operand 0, single buffered']
    #allocation5 [shape = 's32[1]{0}', space=sflag, size = 0x4, scoped, tag = 'scoped memory for tpu_custom_call.1']
    #allocation6 [shape = 's32[1]{0}', space=sflag, size = 0x4, scoped, tag = 'scoped memory for tpu_custom_call.1']
    #allocation7 [shape = 'u8[32768]{0}', space=vmem, size = 0x8000, scoped, tag = 'input window, operand 2, single buffered']
    #allocation8 [shape = 's32[1]{0}', space=sflag, size = 0x4, scoped, tag = 'scoped memory for tpu_custom_call.1']
    #allocation9 [shape = 'u8[32768]{0}', space=vmem, size = 0x8000, scoped, tag = 'input window, operand 3, single buffered']
    #allocation10 [shape = 'u8[4096]{0}', space=vmem, size = 0x1000, scoped, tag = 'output window, operand 0, single buffered']
    %11 = vsyncpa [#allocation5], 0
    %12 = vsyncpa [#allocation8], 0
    %13 = vsyncpa [#allocation6], 0
    // Predicated region
    $region2: #{tpu_custom_call.1} parent=1 // pred_check
      _
    $region3: #{tpu_custom_call.1} parent=1 // pred_check_branch
      %15 = sbr.rel (0) target = $region5
    $region4: #{tpu_custom_call.1} parent=1 // pred_region
      %s17 = ssub.s32 128, 128
      %18 = vsyncadd [#allocation5], %s17
      %s20 = sshll.u32 [#allocation4], 4
      %s21 = int_to_ptr.vmem [resolvable:$true] %s20
      %23 = dma.hbm_to_vmem [thread:$0]  %s0, 128, %s21, [#allocation5]
    $region5: #{tpu_custom_call.1} parent=1 // pred_fallthru
      _
    // Predicated region
    $region6: #{tpu_custom_call.1} parent=1 // pred_check
      _
    $region7: #{tpu_custom_call.1} parent=1 // pred_check_branch
      %25 = sbr.rel (0) target = $region9
    $region8: #{tpu_custom_call.1} parent=1 // pred_region
      _
    $region9: #{tpu_custom_call.1} parent=1 // pred_fallthru
      _
    // Predicated region
    $region10: #{tpu_custom_call.1} parent=1 // pred_check
      _
    $region11: #{tpu_custom_call.1} parent=1 // pred_check_branch
      %27 = sbr.rel (0) target = $region13
    $region12: #{tpu_custom_call.1} parent=1 // pred_region
      %s29 = ssub.s32 1024, 1024
      %30 = vsyncadd [#allocation8], %s29
      %s31 = sshll.u32 [#allocation7], 4
      %s32 = int_to_ptr.vmem [resolvable:$true] %s31
      %37 = dma.hbm_to_vmem [thread:$0]  %s2, 1024, %s32, [#allocation8], 64, 64, 4
    $region13: #{tpu_custom_call.1} parent=1 // pred_fallthru
      _
    // Predicated region
    $region14: #{tpu_custom_call.1} parent=1 // pred_check
      _
    $region15: #{tpu_custom_call.1} parent=1 // pred_check_branch
      %39 = sbr.rel (0) target = $region17
    $region16: #{tpu_custom_call.1} parent=1 // pred_region
      %s41 = ssub.s32 1024, 1024
      %42 = vsyncadd [#allocation8], %s41
      %s43 = sshll.u32 [#allocation9], 4
      %s44 = int_to_ptr.vmem [resolvable:$true] %s43
      %49 = dma.hbm_to_vmem [thread:$0]  %s3, 1024, %s44, [#allocation8], 64, 64, 4
    $region17: #{tpu_custom_call.1} parent=1 // pred_fallthru
      _
    // Predicated region
    $region18: #{tpu_custom_call.1} parent=1 // pred_check
      _
    $region19: #{tpu_custom_call.1} parent=1 // pred_check_branch
      %51 = sbr.rel (0) target = $region21
    $region20: #{tpu_custom_call.1} parent=1 // pred_region
      _
    $region21: #{tpu_custom_call.1} parent=1 // pred_fallthru
      _
    // Predicated region
    $region22: #{tpu_custom_call.1} parent=1 // pred_check
      _
    $region23: #{tpu_custom_call.1} parent=1 // pred_check_branch
      %53 = sbr.rel (0) target = $region25
    $region24: #{tpu_custom_call.1} parent=1 // pred_region
      _
    $region25: #{tpu_custom_call.1} parent=1 // pred_fallthru
      _
    // Predicated region
    $region26: #{tpu_custom_call.1} parent=1 // pred_check
      _
    $region27: #{tpu_custom_call.1} parent=1 // pred_check_branch
      %55 = sbr.rel (0) target = $region29
    $region28: #{tpu_custom_call.1} parent=1 // pred_region
      %56 = dma.done [#allocation5], 128
    $region29: #{tpu_custom_call.1} parent=1 // pred_fallthru
      _
    // Predicated region
    $region30: #{tpu_custom_call.1} parent=1 // pred_check
      _
    $region31: #{tpu_custom_call.1} parent=1 // pred_check_branch
      %58 = sbr.rel (0) target = $region33
    $region32: #{tpu_custom_call.1} parent=1 // pred_region
      %59 = dma.done [#allocation8], 1024
    $region33: #{tpu_custom_call.1} parent=1 // pred_fallthru
      _
    // Predicated region
    $region34: #{tpu_custom_call.1} parent=1 // pred_check
      _
    $region35: #{tpu_custom_call.1} parent=1 // pred_check_branch
      %61 = sbr.rel (0) target = $region37
    $region36: #{tpu_custom_call.1} parent=1 // pred_region
      %62 = dma.done [#allocation8], 1024
    $region37: #{tpu_custom_call.1} parent=1 // pred_fallthru
      _
    %p64 = scmp.eq.s32.totalorder 0, 0
    // Predicated region
    $region38: #{tpu_custom_call.1} parent=1 // pred_check
      %p65 = pneg %p64
    $region39: #{tpu_custom_call.1} parent=1 // pred_check_branch
      %67 = sbr.rel (%p65) target = $region41
    $region40: #{tpu_custom_call.1} parent=1 // pred_region
      %68 = vst [vmem:[#allocation2] sm:$0xff] 0.0
      %69 = vst [vmem:[#allocation3] sm:$0xff] 0.0
    $region41: #{tpu_custom_call.1} parent=1 // pred_fallthru
      _
    %v70 = vld [vmem:[#allocation4] sm:$0xff]
    %v71 = vld [vmem:[%s1] sm:$0x1]
    %v73 = vlaneseq
    %v74 = vshrl.u32 %v73, 7
    %v75 = vsub.s32 0, %v74
    %v76 = vrot.slane %v71, %v75
    %v78 = vmul.f32 %v70, %v76
    %v79 = vpack.c.bf16 %v70, %v70
    %v80 = vpack.c.bf16 %v78, %v78
    %v81 = vld [vmem:[#allocation2] sm:$0xff]
    %v82 = vld [vmem:[#allocation7] sm:$0xf]
    %v83 = vld [vmem:[#allocation7 + $0x4] sm:$0xf]
    %v84 = vld [vmem:[#allocation7 + $0x8] sm:$0xf]
    %v85 = vld [vmem:[#allocation7 + $0xc] sm:$0xf]
    %v86 = vld [vmem:[#allocation7 + $0x10] sm:$0xf]
    %v87 = vld [vmem:[#allocation7 + $0x14] sm:$0xf]
    %v88 = vld [vmem:[#allocation7 + $0x18] sm:$0xf]
    %v89 = vld [vmem:[#allocation7 + $0x1c] sm:$0xf]
    %v90 = vld [vmem:[#allocation7 + $0x20] sm:$0xf]
    %v91 = vld [vmem:[#allocation7 + $0x24] sm:$0xf]
    %v92 = vld [vmem:[#allocation7 + $0x28] sm:$0xf]
    %v93 = vld [vmem:[#allocation7 + $0x2c] sm:$0xf]
    %v94 = vld [vmem:[#allocation7 + $0x30] sm:$0xf]
    %v95 = vld [vmem:[#allocation7 + $0x34] sm:$0xf]
    %v96 = vld [vmem:[#allocation7 + $0x38] sm:$0xf]
    %v97 = vld [vmem:[#allocation7 + $0x3c] sm:$0xf]
    %v114 = vunpack.c.l.b16 %v82
    %v115 = vunpack.c.l.b16 %v83
    %v116 = vunpack.c.l.b16 %v84
    %v117 = vunpack.c.l.b16 %v85
    %v118 = vunpack.c.l.b16 %v86
    %v119 = vunpack.c.l.b16 %v87
    %v120 = vunpack.c.l.b16 %v88
    %v121 = vunpack.c.l.b16 %v89
    %v122 = vunpack.c.l.b16 %v90
    %v123 = vunpack.c.l.b16 %v91
    %v124 = vunpack.c.l.b16 %v92
    %v125 = vunpack.c.l.b16 %v93
    %v126 = vunpack.c.l.b16 %v94
    %v127 = vunpack.c.l.b16 %v95
    %v128 = vunpack.c.l.b16 %v96
    %v129 = vunpack.c.l.b16 %v97
    %v130 = vpack.c.b16 %v115, %v114
    %v131 = vpack.c.b16 %v117, %v116
    %v132 = vpack.c.b16 %v119, %v118
    %v133 = vpack.c.b16 %v121, %v120
    %v134 = vpack.c.b16 %v123, %v122
    %v135 = vpack.c.b16 %v125, %v124
    %v136 = vpack.c.b16 %v127, %v126
    %v137 = vpack.c.b16 %v129, %v128
    %146 = vmatprep.subr.bf16.mxu0 0
    %147 = vmatpush1.bf16.xpose.msra.mxu0 %v130
    %148 = vmatprep.subr.bf16.mxu0 0
    %149 = vmatpush1.bf16.xpose.msra.mxu0 %v131
    %150 = vmatprep.subr.bf16.mxu0 0
    %151 = vmatpush1.bf16.xpose.msra.mxu0 %v132
    %152 = vmatprep.subr.bf16.mxu0 0
    %153 = vmatpush1.bf16.xpose.msra.mxu0 %v133
    %154 = vmatprep.subr.bf16.mxu0 0
    %155 = vmatpush1.bf16.xpose.msra.mxu0 %v134
    %156 = vmatprep.subr.bf16.mxu0 0
    %157 = vmatpush1.bf16.xpose.msra.mxu0 %v135
    %158 = vmatprep.subr.bf16.mxu0 0
    %159 = vmatpush1.bf16.xpose.msra.mxu0 %v136
    %160 = vmatprep.subr.bf16.mxu0 0
    %161 = vmatpush1.bf16.xpose.msra.mxu0 %v137
    %162 = vmatprep.subr.bf16.mxu0 0
    %163 = vmatpush1.bf16.xpose.msra.mxu0 0
    %164 = vmatprep.subr.bf16.mxu0 0
    %165 = vmatpush1.bf16.xpose.msra.mxu0 0
    %166 = vmatprep.subr.bf16.mxu0 0
    %167 = vmatpush1.bf16.xpose.msra.mxu0 0
    %168 = vmatprep.subr.bf16.mxu0 0
    %169 = vmatpush1.bf16.xpose.msra.mxu0 0
    %170 = vmatprep.subr.bf16.mxu0 0
    %171 = vmatpush1.bf16.xpose.msra.mxu0 0
    %172 = vmatprep.subr.bf16.mxu0 0
    %173 = vmatpush1.bf16.xpose.msra.mxu0 0
    %174 = vmatprep.subr.bf16.mxu0 0
    %175 = vmatpush1.bf16.xpose.msra.mxu0 0
    %176 = vmatprep.subr.bf16.mxu0 0
    %177 = vmatpush1.bf16.xpose.msra.mxu0 0
    %178 = vmatprep.mubr.bf16.mxu0 0
    %179 = vmatmul.mubr.bf16.gmra.mrb[0].mxu0 %v79
    %v180 = vpop.f32.mrb[0].mxu0
    %v181 = vadd.f32 0.0, %v180
    %v182 = vpop.f32.mrb[0].mxu0
    %v183 = vpop.f32.mrb[0].mxu0
    %v184 = vpop.f32.mrb[0].mxu0
    %185 = vdwg.mxu0
    %v186 = vadd.f32 %v81, %v181
    %187 = vst [vmem:[#allocation2] sm:$0xff] %v186
    %v188 = vld [vmem:[#allocation3] sm:$0xff]
    %v189 = vld [vmem:[#allocation9] sm:$0xf]
    %v190 = vld [vmem:[#allocation9 + $0x4] sm:$0xf]
    %v191 = vld [vmem:[#allocation9 + $0x8] sm:$0xf]
    %v192 = vld [vmem:[#allocation9 + $0xc] sm:$0xf]
    %v193 = vld [vmem:[#allocation9 + $0x10] sm:$0xf]
    %v194 = vld [vmem:[#allocation9 + $0x14] sm:$0xf]
    %v195 = vld [vmem:[#allocation9 + $0x18] sm:$0xf]
    %v196 = vld [vmem:[#allocation9 + $0x1c] sm:$0xf]
    %v197 = vld [vmem:[#allocation9 + $0x20] sm:$0xf]
    %v198 = vld [vmem:[#allocation9 + $0x24] sm:$0xf]
    %v199 = vld [vmem:[#allocation9 + $0x28] sm:$0xf]
    %v200 = vld [vmem:[#allocation9 + $0x2c] sm:$0xf]
    %v201 = vld [vmem:[#allocation9 + $0x30] sm:$0xf]
    %v202 = vld [vmem:[#allocation9 + $0x34] sm:$0xf]
    %v203 = vld [vmem:[#allocation9 + $0x38] sm:$0xf]
    %v204 = vld [vmem:[#allocation9 + $0x3c] sm:$0xf]
    %v221 = vunpack.c.l.b16 %v189
    %v222 = vunpack.c.l.b16 %v190
    %v223 = vunpack.c.l.b16 %v191
    %v224 = vunpack.c.l.b16 %v192
    %v225 = vunpack.c.l.b16 %v193
    %v226 = vunpack.c.l.b16 %v194
    %v227 = vunpack.c.l.b16 %v195
    %v228 = vunpack.c.l.b16 %v196
    %v229 = vunpack.c.l.b16 %v197
    %v230 = vunpack.c.l.b16 %v198
    %v231 = vunpack.c.l.b16 %v199
    %v232 = vunpack.c.l.b16 %v200
    %v233 = vunpack.c.l.b16 %v201
    %v234 = vunpack.c.l.b16 %v202
    %v235 = vunpack.c.l.b16 %v203
    %v236 = vunpack.c.l.b16 %v204
    %v237 = vpack.c.b16 %v222, %v221
    %v238 = vpack.c.b16 %v224, %v223
    %v239 = vpack.c.b16 %v226, %v225
    %v240 = vpack.c.b16 %v228, %v227
    %v241 = vpack.c.b16 %v230, %v229
    %v242 = vpack.c.b16 %v232, %v231
    %v243 = vpack.c.b16 %v234, %v233
    %v244 = vpack.c.b16 %v236, %v235
    %253 = vmatprep.subr.bf16.mxu0 0
    %254 = vmatpush1.bf16.xpose.msra.mxu0 %v237
    %255 = vmatprep.subr.bf16.mxu0 0
    %256 = vmatpush1.bf16.xpose.msra.mxu0 %v238
    %257 = vmatprep.subr.bf16.mxu0 0
    %258 = vmatpush1.bf16.xpose.msra.mxu0 %v239
    %259 = vmatprep.subr.bf16.mxu0 0
    %260 = vmatpush1.bf16.xpose.msra.mxu0 %v240
    %261 = vmatprep.subr.bf16.mxu0 0
    %262 = vmatpush1.bf16.xpose.msra.mxu0 %v241
    %263 = vmatprep.subr.bf16.mxu0 0
    %264 = vmatpush1.bf16.xpose.msra.mxu0 %v242
    %265 = vmatprep.subr.bf16.mxu0 0
    %266 = vmatpush1.bf16.xpose.msra.mxu0 %v243
    %267 = vmatprep.subr.bf16.mxu0 0
    %268 = vmatpush1.bf16.xpose.msra.mxu0 %v244
    %269 = vmatprep.subr.bf16.mxu0 0
    %270 = vmatpush1.bf16.xpose.msra.mxu0 0
    %271 = vmatprep.subr.bf16.mxu0 0
    %272 = vmatpush1.bf16.xpose.msra.mxu0 0
    %273 = vmatprep.subr.bf16.mxu0 0
    %274 = vmatpush1.bf16.xpose.msra.mxu0 0
    %275 = vmatprep.subr.bf16.mxu0 0
    %276 = vmatpush1.bf16.xpose.msra.mxu0 0
    %277 = vmatprep.subr.bf16.mxu0 0
    %278 = vmatpush1.bf16.xpose.msra.mxu0 0
    %279 = vmatprep.subr.bf16.mxu0 0
    %280 = vmatpush1.bf16.xpose.msra.mxu0 0
    %281 = vmatprep.subr.bf16.mxu0 0
    %282 = vmatpush1.bf16.xpose.msra.mxu0 0
    %283 = vmatprep.subr.bf16.mxu0 0
    %284 = vmatpush1.bf16.xpose.msra.mxu0 0
    %285 = vmatprep.mubr.bf16.mxu0 0
    %286 = vmatmul.mubr.bf16.gmra.mrb[0].mxu0 %v80
    %v287 = vpop.f32.mrb[0].mxu0
    %v288 = vadd.f32 0.0, %v287
    %v289 = vpop.f32.mrb[0].mxu0
    %v290 = vpop.f32.mrb[0].mxu0
    %v291 = vpop.f32.mrb[0].mxu0
    %292 = vdwg.mxu0
    %v293 = vadd.f32 %v188, %v288
    %294 = vst [vmem:[#allocation3] sm:$0xff] %v293
    // Predicated region
    $region42: #{tpu_custom_call.1} parent=1 // pred_check
      %p295 = pneg %p64
    $region43: #{tpu_custom_call.1} parent=1 // pred_check_branch
      %297 = sbr.rel (%p295) target = $region45
    $region44: #{tpu_custom_call.1} parent=1 // pred_region
      %v298 = vld [vmem:[#allocation2] sm:$0xff]
      %v299 = vld [vmem:[%s4] sm:$0x1]
      %v300 = vld [vmem:[#allocation3] sm:$0xff]
      %v302 = vlaneseq
      %v303 = vshrl.u32 %v302, 7
      %v304 = vsub.s32 0, %v303
      %v305 = vrot.slane %v299, %v304
      %v307 = vmul.f32 %v305, %v300
      %v308 = vadd.f32 %v298, %v307
      %v309 = vld [vmem:[%s5] sm:$0x1]
      %v311 = vlaneseq
      %v312 = vshrl.u32 %v311, 7
      %v313 = vsub.s32 0, %v312
      %v314 = vrot.slane %v309, %v313
      %v316 = vadd.f32 %v308, %v314
      %317 = vst [vmem:[#allocation10] sm:$0xff] %v316
    $region45: #{tpu_custom_call.1} parent=1 // pred_fallthru
      _
    // Predicated region
    $region46: #{tpu_custom_call.1} parent=1 // pred_check
      _
    $region47: #{tpu_custom_call.1} parent=1 // pred_check_branch
      %319 = sbr.rel (0) target = $region49
    $region48: #{tpu_custom_call.1} parent=1 // pred_region
      %s321 = ssub.s32 128, 128
      %322 = vsyncadd [#allocation6], %s321
      %s324 = sshll.u32 [#allocation10], 4
      %s325 = int_to_ptr.vmem [resolvable:$true] %s324
      %327 = dma.vmem_to_hbm [thread:$0]  %s325, 128, %s6, [#allocation6]
    $region49: #{tpu_custom_call.1} parent=1 // pred_fallthru
      _
    // Predicated region
    $region50: #{tpu_custom_call.1} parent=1 // pred_check
      _
    $region51: #{tpu_custom_call.1} parent=1 // pred_check_branch
      %329 = sbr.rel (0) target = $region53
    $region52: #{tpu_custom_call.1} parent=1 // pred_region
      %330 = dma.done [#allocation6], 128
    $region53: #{tpu_custom_call.1} parent=1 // pred_fallthru
      _
    %331 = vsyncpa [#allocation5], 1
    %332 = vsyncpa [#allocation8], 1
    %333 = vsyncpa [#allocation6], 1

</llo_original>
